<compile_context>
chip_gen: v6e
topology: v6e:2x2x1
jax: 0.10.0
libtpu: 0.0.40
codegen_flags: <defaults>
</compile_context>

<pallas_src>
import functools

import jax
import jax.numpy as jnp
from jax.experimental import pallas as pl
from jax.experimental.pallas import tpu as pltpu


def _hsigmoid_kernel(x_ref, o_ref):
    x = x_ref[...].astype(jnp.float32)
    y = jnp.minimum(jnp.maximum(x + 3.0, 0.0), 6.0) * (1.0 / 6.0)
    o_ref[...] = y.astype(o_ref.dtype)


def _hsigmoid_jnp(x):
    # Reference / fallback path (ragged tails, tiny tensors, 64-bit floats).
    return (jnp.clip(x + 3.0, 0.0, 6.0) / 6.0).astype(x.dtype)


_LANE_CHOICES = (1024, 512, 256, 128)


@functools.lru_cache(maxsize=1)
def _tpu_params():
    """Returns (per-buffer block byte target, vmem_limit_bytes, num_tensorcores)."""
    vmem_bytes = 64 << 20  # conservative default: v7x has 64 MiB per TC
    kind = ""
    try:
        info = pltpu.get_tpu_info()
        vmem_bytes = int(getattr(info, "vmem_capacity_bytes", vmem_bytes))
    except Exception:
        pass
    try:
        kind = jax.devices()[0].device_kind.lower()
    except Exception:
        pass
    if "v7" in kind:
        # v7x: 64 MiB VMEM per TC, 2 TensorCores per chip.
        return 10 << 20, 52 << 20, 2
    if vmem_bytes >= (100 << 20) or ("v5" in kind) or ("v6" in kind):
        # v5e / v6e: 128 MiB VMEM, single TensorCore -> bigger blocks.
        return 14 << 20, 88 << 20, 1
    # Unknown hardware: stay conservative (v7x-safe sizing).
    return 10 << 20, 52 << 20, 1


def hsigmoid(x, *, donate_input=False):
    """Elementwise hard-sigmoid.  Float inputs of any shape; ints promote to f32."""
    orig_shape = x.shape
    if not jnp.issubdtype(x.dtype, jnp.floating):
        # Match PyTorch promotion of `int_tensor + 3.0` -> float.
        # NOTE: output dtype is float32 for integer inputs.
        x = x.astype(jnp.float32)
    out_dtype = x.dtype
    n = x.size
    if n == 0:
        return jnp.zeros(orig_shape, out_dtype)

    itemsize = jnp.dtype(out_dtype).itemsize

    # Ragged sizes, 64-bit floats and tiny tensors: plain XLA elementwise is
    # already at the HBM roofline (one read + one write) and avoids either a
    # pad/slice HBM round trip or kernel-launch overhead.
    if (n % 128 != 0) or (itemsize > 4) or (n < 1024):
        return _hsigmoid_jnp(x)

    # Widest lane count that divides n exactly -> no padding, lane-dense stores.
    lane_width = 128
    for lw in _LANE_CHOICES:
        if n % lw == 0:
            lane_width = lw
            break
    rows = n // lane_width
    x2d = x.reshape(rows, lane_width)

    target_block_bytes, vmem_limit, num_tc = _tpu_params()

    # dtype-aware sublane multiple: 8 (f32), 16 (bf16/f16), 32 (int8/fp8).
    sub = max(8, 32 // itemsize)
    budget_rows = max(sub, (target_block_bytes // (lane_width * itemsize)) // sub * sub)

    if rows <= budget_rows:
        if num_tc >= 2 and rows >= 2 * sub:
            # Two balanced blocks so both v7x TensorCores get work.
            tile_rows = ((pl.cdiv(rows, 2) + sub - 1) // sub) * sub
        else:
            tile_rows = rows  # single full-extent block (always a legal shape)
    else:
        steps = pl.cdiv(rows, budget_rows)
        if num_tc >= 2 and steps % 2:
            steps += 1  # even step count -> balanced dual-TC sharding
        tile_rows = ((pl.cdiv(rows, steps) + sub - 1) // sub) * sub
        tile_rows = min(tile_rows, budget_rows)

    grid = (pl.cdiv(rows, tile_rows),)

    out = pl.pallas_call(
        _hsigmoid_kernel,
        out_shape=jax.ShapeDtypeStruct((rows, lane_width), out_dtype),
        grid_spec=pltpu.PrefetchScalarGridSpec(
            num_scalar_prefetch=0,
            grid=grid,
            in_specs=[pl.BlockSpec((tile_rows, lane_width), lambda i: (i, 0))],
            out_specs=pl.BlockSpec((tile_rows, lane_width), lambda i: (i, 0)),
        ),
        compiler_params=pltpu.CompilerParams(
            dimension_semantics=("parallel",),
            vmem_limit_bytes=vmem_limit,
        ),
        cost_estimate=pl.CostEstimate(
            flops=4 * n, transcendentals=0, bytes_accessed=2 * n * itemsize
        ),
        # Only alias when the caller guarantees the input is dead/donatable;
        # otherwise XLA would insert a defensive copy.
        input_output_aliases=({0: 0} if donate_input else {}),
    )(x2d)

    return out.reshape(orig_shape)


if __name__ == "__main__":
    key = jax.random.PRNGKey(0)

    # NCHW feature map, the shape implied by the module's typical use.
    x = jax.random.normal(key, (2, 4, 16, 16), dtype=jnp.float32) * 4.0
    y = jax.block_until_ready(hsigmoid(x))
    y_ref = _hsigmoid_jnp(x)
    assert y.shape == x.shape and y.dtype == x.dtype
    assert jnp.max(jnp.abs(y - y_ref)) < 1e-6, "f32 mismatch vs reference"

    # bf16 path (dtype-aware sublane rounding, f32 internal math).
    x_bf = jax.random.normal(jax.random.PRNGKey(1), (8, 32, 64, 64), dtype=jnp.bfloat16) * 4.0
    y_bf = jax.block_until_ready(hsigmoid(x_bf))
    y_bf_ref = _hsigmoid_jnp(x_bf)
    assert y_bf.shape == x_bf.shape and y_bf.dtype == x_bf.dtype
    assert jnp.max(jnp.abs(y_bf.astype(jnp.float32) - y_bf_ref.astype(jnp.float32))) < 1e-2

    # Larger slab exercising the multi-step (grid > 1) pipelined path.
    x_big = jax.random.normal(jax.random.PRNGKey(2), (4096, 1024), dtype=jnp.float32) * 4.0
    y_big = jax.block_until_ready(hsigmoid(x_big))
    assert jnp.max(jnp.abs(y_big - _hsigmoid_jnp(x_big))) < 1e-6, "big mismatch vs reference"

    # Ragged size (not a multiple of 128) takes the copy-free jnp path.
    x_rag = jax.random.normal(jax.random.PRNGKey(3), (3, 5, 7), dtype=jnp.float32) * 4.0
    y_rag = jax.block_until_ready(hsigmoid(x_rag))
    assert jnp.max(jnp.abs(y_rag - _hsigmoid_jnp(x_rag))) < 1e-6, "ragged mismatch"

    print("KERNEL_OK")
</pallas_src>

<mosaic_0001>
module attributes {stable_mosaic.version = 11 : i64} {
  func.func @_hsigmoid_kernel(%arg0: i32, %arg1: memref<2x1024xf32, #tpu.memory_space<vmem>>, %arg2: memref<2x1024xf32, #tpu.memory_space<vmem>>) attributes {dimension_semantics = [#tpu.dimension_semantics<parallel>], iteration_bounds = array<i64: 1>, scalar_prefetch = 0 : i64, scratch_operands = 0 : i64, tpu.core_type = #tpu.core_type<tc>, window_params = [{transform_indices = @transform_0, window_bounds = array<i64: 2, 1024>}, {transform_indices = @transform_1, window_bounds = array<i64: 2, 1024>}]} {
    %c0 = arith.constant 0 : index
    %c0_0 = arith.constant 0 : index
    %0 = vector.load %arg1[%c0, %c0_0] : memref<2x1024xf32, #tpu.memory_space<vmem>>, vector<2x1024xf32>
    %cst = arith.constant 3.000000e+00 : f32
    %1 = vector.broadcast %cst : f32 to vector<2x1024xf32>
    %2 = arith.addf %0, %1 : vector<2x1024xf32>
    %cst_1 = arith.constant 0.000000e+00 : f32
    %3 = vector.broadcast %cst_1 : f32 to vector<2x1024xf32>
    %4 = arith.maximumf %2, %3 : vector<2x1024xf32>
    %cst_2 = arith.constant 6.000000e+00 : f32
    %5 = vector.broadcast %cst_2 : f32 to vector<2x1024xf32>
    %6 = arith.minimumf %4, %5 : vector<2x1024xf32>
    %cst_3 = arith.constant 0.166666672 : f32
    %7 = vector.broadcast %cst_3 : f32 to vector<2x1024xf32>
    %8 = arith.mulf %6, %7 : vector<2x1024xf32>
    %c0_4 = arith.constant 0 : index
    %c0_5 = arith.constant 0 : index
    %9 = vector.load %arg2[%c0_4, %c0_5] : memref<2x1024xf32, #tpu.memory_space<vmem>>, vector<2x1024xf32>
    tpu.vector_store %arg2[%c0_4, %c0_5], %8 {strides = array<i32>} : memref<2x1024xf32, #tpu.memory_space<vmem>>, vector<2x1024xf32>,
    return
  }
  func.func @transform_0(%arg0: i32) -> (i32, i32) {
    %c0_i32 = arith.constant 0 : i32
    %c0_i32_0 = arith.constant 0 : i32
    return %arg0, %c0_i32 : i32, i32
  }
  func.func @transform_1(%arg0: i32) -> (i32, i32) {
    %c0_i32 = arith.constant 0 : i32
    %c0_i32_0 = arith.constant 0 : i32
    return %arg0, %c0_i32 : i32, i32
  }
}

</mosaic_0001>

<llo_original>
// kernel: tpu_custom_call.1
$region0: #{tpu_custom_call.1}
  #allocation0 [shape = 'u32[]', space=smem, size = 0x4, offset = 0x4, fixed_abs, tag = 'smem constant byte address 0x4 - core index']
  #allocation1 [shape = 'u32[144,128]{1,0:T(1,128)}', space=vmem, size = 0x12000, scoped, tag = 'internal scratch']
  %s0 = inlined_call_operand.hbm [shape: f32[2,1024], index: 0, kind: input, shape index: {}]
  %s1 = inlined_call_operand.hbm [shape: f32[2,1024], index: 1, kind: output, shape index: {}]
  %s2 = sld [smem:[#allocation0]]
  $region18: #{tpu_custom_call.1} parent=0
    _
  %s4 = ssub.s32 1, %s2
  %s5 = scalar_select 0, %s4, %s2
  $region1: #{tpu_custom_call.1} parent=0
    #allocation2 [shape = 'u8[8192]{0}', space=vmem, size = 0x2000, scoped, tag = 'input window, operand 0, single buffered']
    #allocation3 [shape = 's32[1]{0}', space=sflag, size = 0x4, scoped, tag = 'scoped memory for tpu_custom_call.1']
    #allocation4 [shape = 's32[1]{0}', space=sflag, size = 0x4, scoped, tag = 'scoped memory for tpu_custom_call.1']
    #allocation5 [shape = 'u8[8192]{0}', space=vmem, size = 0x2000, scoped, tag = 'output window, operand 0, single buffered']
    %6 = vsyncpa [#allocation3], 0
    %7 = vsyncpa [#allocation4], 0
    // Predicated region
    $region2: #{tpu_custom_call.1} parent=1 // pred_check
      _
    $region3: #{tpu_custom_call.1} parent=1 // pred_check_branch
      %9 = sbr.rel (0) target = $region5
    $region4: #{tpu_custom_call.1} parent=1 // pred_region
      %s11 = ssub.s32 256, 256
      %12 = vsyncadd [#allocation3], %s11
      %s14 = sshll.u32 [#allocation2], 4
      %s15 = int_to_ptr.vmem [resolvable:$true] %s14
      %17 = dma.hbm_to_vmem [thread:$0]  %s0, 256, %s15, [#allocation3]
    $region5: #{tpu_custom_call.1} parent=1 // pred_fallthru
      _
    // Predicated region
    $region6: #{tpu_custom_call.1} parent=1 // pred_check
      _
    $region7: #{tpu_custom_call.1} parent=1 // pred_check_branch
      %19 = sbr.rel (0) target = $region9
    $region8: #{tpu_custom_call.1} parent=1 // pred_region
      %20 = dma.done [#allocation3], 256
    $region9: #{tpu_custom_call.1} parent=1 // pred_fallthru
      _
    %v21 = vld [vmem:[#allocation2] sm:$0xff]
    %v22 = vld [vmem:[#allocation2 + $0x8] sm:$0xff]
    %v23 = vadd.f32 %v21, 3.0
    %v24 = vadd.f32 %v22, 3.0
    %v25 = vmax.f32 %v23, 0.0
    %v26 = vmax.f32 %v24, 0.0
    %v27 = vmin.f32 %v25, 6.0
    %v28 = vmin.f32 %v26, 6.0
    %v29 = vmul.f32 %v27, 0.16666667
    %v30 = vmul.f32 %v28, 0.16666667
    %31 = vst [vmem:[#allocation5] sm:$0xff] %v29
    %32 = vst [vmem:[#allocation5 + $0x8] sm:$0xff] %v30
    // Predicated region
    $region10: #{tpu_custom_call.1} parent=1 // pred_check
      _
    $region11: #{tpu_custom_call.1} parent=1 // pred_check_branch
      %34 = sbr.rel (0) target = $region13
    $region12: #{tpu_custom_call.1} parent=1 // pred_region
      %s36 = ssub.s32 256, 256
      %37 = vsyncadd [#allocation4], %s36
      %s39 = sshll.u32 [#allocation5], 4
      %s40 = int_to_ptr.vmem [resolvable:$true] %s39
      %42 = dma.vmem_to_hbm [thread:$0]  %s40, 256, %s1, [#allocation4]
    $region13: #{tpu_custom_call.1} parent=1 // pred_fallthru
      _
    // Predicated region
    $region14: #{tpu_custom_call.1} parent=1 // pred_check
      _
    $region15: #{tpu_custom_call.1} parent=1 // pred_check_branch
      %44 = sbr.rel (0) target = $region17
    $region16: #{tpu_custom_call.1} parent=1 // pred_region
      %45 = dma.done [#allocation4], 256
    $region17: #{tpu_custom_call.1} parent=1 // pred_fallthru
      _
    %46 = vsyncpa [#allocation3], 1
    %47 = vsyncpa [#allocation4], 1

</llo_original>
